<compile_context>
chip_gen: v6e
topology: v6e:2x2x1
jax: 0.10.0
libtpu: 0.0.40
codegen_flags: <defaults>
</compile_context>

<pallas_src>
import math

import jax
import jax.numpy as jnp
from jax.experimental import pallas as pl
from jax.experimental.pallas import tpu as pltpu


# ----------------------------------------------------------------------------
# Kernel
# ----------------------------------------------------------------------------
def soap_kernel(x_ref, cos_ref, sin_ref, o_ref):
    """Rotate interleaved even/odd feature pairs of one lane-dense (tR, D) tile.

    x_ref   : (tR, D)  input rows, interleaved even/odd features (raw dtype)
    cos_ref : (tR, 1)  per-row cos, compute dtype
    sin_ref : (tR, 1)  per-row sin, compute dtype
    o_ref   : (tR, D)  rotated rows, same layout/dtype as x
    """
    x = x_ref[...]
    D = x.shape[-1]

    # Pair partner via two XLU lane rolls on the raw dtype (pure data movement;
    # bf16 moves 2x elements per roll) plus one lane-parity select:
    #   partner[:, 2i] = x[:, 2i+1] ; partner[:, 2i+1] = x[:, 2i]
    nxt = pltpu.roll(x, shift=D - 1, axis=1)   # nxt[:, j] = x[:, (j + 1) % D]
    prv = pltpu.roll(x, shift=1, axis=1)       # prv[:, j] = x[:, (j - 1) % D]

    lane = jax.lax.broadcasted_iota(jnp.int32, (1, D), 1)   # (1, D), not (tR, D)
    is_even = (lane & 1) == 0
    partner = jnp.where(is_even, nxt, prv)     # wraparound lanes are discarded by the select

    # out[:, 2i]   = x[:, 2i]   * c - x[:, 2i+1] * s
    # out[:, 2i+1] = x[:, 2i+1] * c + x[:, 2i]   * s
    c = cos_ref[...]                           # (tR, 1) -> broadcasts across lanes
    s = sin_ref[...]
    cdt = c.dtype                              # compute dtype: f32, or bf16 for bf16 inputs
    sgn = jnp.where(is_even, -1.0, 1.0).astype(cdt)          # (1, D) sign row
    o_ref[...] = (x.astype(cdt) * c + partner.astype(cdt) * (s * sgn)).astype(o_ref.dtype)


# ----------------------------------------------------------------------------
# Wrapper
# ----------------------------------------------------------------------------
def _angle_tables(seq_len, num_angles):
    """Per-position cos/sin, shape (S, 1), f32 (matches the module's first forward)."""
    angles = jnp.linspace(
        0.0, 2.0 * math.pi - 2.0 * math.pi / num_angles, num_angles, dtype=jnp.float32
    )
    angles = jnp.roll(angles, shift=1, axis=0)   # forward rolls the buffer before use
    sel = angles[jnp.arange(seq_len) % num_angles]          # (S,)
    return jnp.cos(sel)[:, None], jnp.sin(sel)[:, None]     # (S, 1) each, f32


def _choose_row_tile(rows, lanes, itemsize):
    """Row-tile heuristic for the flattened (rows, lanes) view.

    ~1 MiB blocks (double-buffered in+out stays well under every chip's scoped
    VMEM), but capped so the grid has >= ~8 steps whenever rows allow it, so
    both v7x TensorCores get work and the DMA pipeline has depth.
    """
    sub = {1: 32, 2: 16}.get(itemsize, 8)            # dtype-aware sublane multiple
    target = max(sub, (1 << 20) // (lanes * itemsize))
    cap = max(sub, (rows // 8) // sub * sub)         # aim for >= 8 grid steps
    t = max(sub, (min(target, cap) // sub) * sub)
    if t >= rows:
        return rows                                  # single full-extent block
    return t


def _soap_fused(xf, cos_r, sin_r, tR):
    rows, lanes = xf.shape
    itemsize = jnp.dtype(xf.dtype).itemsize
    grid = (pl.cdiv(rows, tR),)
    x_spec = pl.BlockSpec((tR, lanes), lambda i: (i, 0))
    vec_spec = pl.BlockSpec((tR, 1), lambda i: (i, 0))
    # TODO(synk): consider pipeline_mode=pl.Buffered(3) on x_spec for deeper
    # pipelining once validated on the target chip generation.
    cost = pl.CostEstimate(
        flops=int(5 * rows * lanes),
        transcendentals=0,
        bytes_accessed=int(2 * rows * lanes * itemsize
                           + 2 * rows * jnp.dtype(cos_r.dtype).itemsize),
    )
    return pl.pallas_call(
        soap_kernel,
        out_shape=jax.ShapeDtypeStruct((rows, lanes), xf.dtype),
        grid=grid,
        in_specs=[x_spec, vec_spec, vec_spec],
        out_specs=x_spec,
        compiler_params=pltpu.CompilerParams(
            dimension_semantics=("parallel",),
            vmem_limit_bytes=32 * 1024 * 1024,
        ),
        cost_estimate=cost,
    )(xf, cos_r, sin_r)


def soap_forward(x, num_angles, *, row_tile=None):
    """Equivalent of SymmetricalOverlapAngularPositions.forward (first call).

    TODO(synk): the PyTorch module re-rolls its persistent angle buffer on every
    forward call (stateful); only the first-call semantics are implemented here.
    """
    B, S, D = x.shape
    assert D % 2 == 0, "feature dim must be even for rotary embeddings"

    # bf16 inputs compute in bf16 (v6e/v7x VALUs are bf16-native); everything
    # else computes in f32.  TODO(synk): could keep f32 compute on v5e via
    # pltpu.get_tpu_info(), left dtype-driven for simplicity (still correct).
    compute_dtype = jnp.bfloat16 if x.dtype == jnp.bfloat16 else jnp.float32

    cos_s, sin_s = _angle_tables(S, num_angles)                  # (S, 1) f32
    rows = B * S
    cos_r = jnp.broadcast_to(cos_s, (B, S, 1)).reshape(rows, 1).astype(compute_dtype)
    sin_r = jnp.broadcast_to(sin_s, (B, S, 1)).reshape(rows, 1).astype(compute_dtype)

    # Flatten (B, S) -> rows; pad the lane dim up to a multiple of 128 so the
    # kernel always sees a lane-dense tile (padding is even, so pairs stay
    # aligned and padded lanes stay zero).
    xf = x.reshape(rows, D)
    lanes = ((D + 127) // 128) * 128
    if lanes != D:
        xf = jnp.pad(xf, ((0, 0), (0, lanes - D)))

    itemsize = jnp.dtype(x.dtype).itemsize
    if row_tile is None:
        row_tile = _choose_row_tile(rows, lanes, itemsize)
    sub = {1: 32, 2: 16}.get(itemsize, 8)
    assert row_tile == rows or row_tile % sub == 0, (
        f"row_tile must be {rows} (full) or a multiple of {sub} for this dtype"
    )

    out = _soap_fused(xf, cos_r, sin_r, row_tile)
    if lanes != D:
        out = out[:, :D]
    return out.reshape(B, S, D)


# ----------------------------------------------------------------------------
# Pure-JAX reference (mirrors the PyTorch forward on its first call)
# ----------------------------------------------------------------------------
def soap_reference(x, num_angles):
    B, S, D = x.shape
    xf = x.astype(jnp.float32)
    angles = jnp.linspace(
        0.0, 2.0 * math.pi - 2.0 * math.pi / num_angles, num_angles, dtype=jnp.float32
    )
    angles = jnp.roll(angles, 1)
    sel = angles[jnp.arange(S) % num_angles]
    cos_a = jnp.cos(sel)[:, None]
    sin_a = jnp.sin(sel)[:, None]
    xe, xo = xf[..., 0::2], xf[..., 1::2]
    re = xe * cos_a - xo * sin_a
    ro = xe * sin_a + xo * cos_a
    return jnp.stack([re, ro], axis=-1).reshape(B, S, D)


if __name__ == "__main__":
    k0, k1, k2, k3 = jax.random.split(jax.random.PRNGKey(0), 4)

    # 1) small demo: batch=2, seq=8, feature dim=128 (lane-dense path, 2-step grid)
    x1 = jax.random.normal(k0, (2, 8, 128), dtype=jnp.float32)
    o1 = jax.block_until_ready(soap_forward(x1, num_angles=6))
    r1 = soap_reference(x1, 6)
    assert o1.shape == x1.shape and o1.dtype == x1.dtype
    assert jnp.allclose(o1, r1, atol=1e-5, rtol=1e-5), "f32 mismatch"

    # 2) exercise row tiling (forced tile -> 8-step grid)
    x2 = jax.random.normal(k1, (2, 64, 128), dtype=jnp.float32)
    o2 = jax.block_until_ready(soap_forward(x2, num_angles=7, row_tile=16))
    r2 = soap_reference(x2, 7)
    assert jnp.allclose(o2, r2, atol=1e-5, rtol=1e-5), "tiled f32 mismatch"

    # 3) bf16 input: rotation computed in bf16 (native on v6e/v7x)
    x3 = jax.random.normal(k2, (2, 16, 128), dtype=jnp.bfloat16)
    o3 = jax.block_until_ready(soap_forward(x3, num_angles=5))
    r3 = soap_reference(x3, 5)
    assert o3.dtype == jnp.bfloat16
    assert jnp.allclose(o3.astype(jnp.float32), r3, atol=5e-2, rtol=2e-2), "bf16 mismatch"

    # 4) feature dim not a multiple of 128 lanes -> zero-pad to 128, fused kernel, slice
    x4 = jax.random.normal(k3, (2, 8, 32), dtype=jnp.float32)
    o4 = jax.block_until_ready(soap_forward(x4, num_angles=6))
    r4 = soap_reference(x4, 6)
    assert jnp.allclose(o4, r4, atol=1e-5, rtol=1e-5), "padded-D mismatch"

    print("KERNEL_OK")
</pallas_src>

<mosaic_0001>
module attributes {stable_mosaic.version = 11 : i64} {
  func.func @soap_kernel(%arg0: i32, %arg1: memref<8x128xf32, #tpu.memory_space<vmem>>, %arg2: memref<8x1xf32, #tpu.memory_space<vmem>>, %arg3: memref<8x1xf32, #tpu.memory_space<vmem>>, %arg4: memref<8x128xf32, #tpu.memory_space<vmem>>) attributes {dimension_semantics = [#tpu.dimension_semantics<parallel>], iteration_bounds = array<i64: 2>, scalar_prefetch = 0 : i64, scratch_operands = 0 : i64, tpu.core_type = #tpu.core_type<tc>, window_params = [{transform_indices = @transform_0, window_bounds = array<i64: 8, 128>}, {transform_indices = @transform_1, window_bounds = array<i64: 8, 1>}, {transform_indices = @transform_2, window_bounds = array<i64: 8, 1>}, {transform_indices = @transform_3, window_bounds = array<i64: 8, 128>}]} {
    %c0 = arith.constant 0 : index
    %c0_0 = arith.constant 0 : index
    %0 = vector.load %arg1[%c0, %c0_0] : memref<8x128xf32, #tpu.memory_space<vmem>>, vector<8x128xf32>
    %c127_i32 = arith.constant 127 : i32
    %1 = tpu.dynamic_rotate %0 by %c127_i32 dim 1 : vector<8x128xf32>, i32 -> vector<8x128xf32>
    %c1_i32 = arith.constant 1 : i32
    %2 = tpu.dynamic_rotate %0 by %c1_i32 dim 1 : vector<8x128xf32>, i32 -> vector<8x128xf32>
    %3 = tpu.iota {dimensions = array<i32: 1>} : vector<1x128xi32>
    %c1_i32_1 = arith.constant 1 : i32
    %4 = vector.broadcast %c1_i32_1 : i32 to vector<1x128xi32>
    %5 = arith.andi %3, %4 : vector<1x128xi32>
    %c0_i32 = arith.constant 0 : i32
    %6 = vector.broadcast %c0_i32 : i32 to vector<1x128xi32>
    %7 = arith.cmpi eq, %5, %6 : vector<1x128xi32>
    %8 = vector.shape_cast %7 : vector<1x128xi1> to vector<1x128xi1>
    %9 = vector.broadcast %8 : vector<1x128xi1> to vector<8x128xi1>
    %10 = arith.select %9, %1, %2 : vector<8x128xi1>, vector<8x128xf32>
    %c0_2 = arith.constant 0 : index
    %c0_3 = arith.constant 0 : index
    %11 = vector.load %arg2[%c0_2, %c0_3] : memref<8x1xf32, #tpu.memory_space<vmem>>, vector<8x1xf32>
    %c0_4 = arith.constant 0 : index
    %c0_5 = arith.constant 0 : index
    %12 = vector.load %arg3[%c0_4, %c0_5] : memref<8x1xf32, #tpu.memory_space<vmem>>, vector<8x1xf32>
    %cst = arith.constant -1.000000e+00 : f32
    %cst_6 = arith.constant 1.000000e+00 : f32
    %13 = vector.broadcast %cst : f32 to vector<1x128xf32>
    %14 = vector.broadcast %cst_6 : f32 to vector<1x128xf32>
    %15 = arith.select %7, %13, %14 : vector<1x128xi1>, vector<1x128xf32>
    %16 = vector.broadcast %11 : vector<8x1xf32> to vector<8x128xf32>
    %17 = arith.mulf %0, %16 : vector<8x128xf32>
    %18 = vector.broadcast %12 : vector<8x1xf32> to vector<8x128xf32>
    %19 = vector.broadcast %15 : vector<1x128xf32> to vector<8x128xf32>
    %20 = arith.mulf %18, %19 : vector<8x128xf32>
    %21 = arith.mulf %10, %20 : vector<8x128xf32>
    %22 = arith.addf %17, %21 : vector<8x128xf32>
    %c0_7 = arith.constant 0 : index
    %c0_8 = arith.constant 0 : index
    %23 = vector.load %arg4[%c0_7, %c0_8] : memref<8x128xf32, #tpu.memory_space<vmem>>, vector<8x128xf32>
    tpu.vector_store %arg4[%c0_7, %c0_8], %22 {strides = array<i32>} : memref<8x128xf32, #tpu.memory_space<vmem>>, vector<8x128xf32>,
    return
  }
  func.func @transform_0(%arg0: i32) -> (i32, i32) {
    %c0_i32 = arith.constant 0 : i32
    %c0_i32_0 = arith.constant 0 : i32
    return %arg0, %c0_i32 : i32, i32
  }
  func.func @transform_1(%arg0: i32) -> (i32, i32) {
    %c0_i32 = arith.constant 0 : i32
    %c0_i32_0 = arith.constant 0 : i32
    return %arg0, %c0_i32 : i32, i32
  }
  func.func @transform_2(%arg0: i32) -> (i32, i32) {
    %c0_i32 = arith.constant 0 : i32
    %c0_i32_0 = arith.constant 0 : i32
    return %arg0, %c0_i32 : i32, i32
  }
  func.func @transform_3(%arg0: i32) -> (i32, i32) {
    %c0_i32 = arith.constant 0 : i32
    %c0_i32_0 = arith.constant 0 : i32
    return %arg0, %c0_i32 : i32, i32
  }
}

</mosaic_0001>

<llo_original>
// kernel: tpu_custom_call.1
$region0: #{tpu_custom_call.1}
  #allocation0 [shape = 'u32[]', space=smem, size = 0x4, offset = 0x4, fixed_abs, tag = 'smem constant byte address 0x4 - core index']
  #allocation1 [shape = 'u32[144,128]{1,0:T(1,128)}', space=vmem, size = 0x12000, scoped, tag = 'internal scratch']
  %s0 = inlined_call_operand.vmem [shape: f32[16,128], index: 0, kind: input, shape index: {}]
  %s1 = inlined_call_operand.vmem [shape: f32[16,1], index: 1, kind: input, shape index: {}]
  %s2 = inlined_call_operand.vmem [shape: f32[16,1], index: 2, kind: input, shape index: {}]
  %s3 = inlined_call_operand.hbm [shape: f32[16,128], index: 3, kind: output, shape index: {}]
  %s4 = sld [smem:[#allocation0]]
  $region45: #{tpu_custom_call.1} parent=0
    _
  %s6 = ssub.s32 1, %s4
  %s7 = scalar_select 0, %s6, %s4
  $region1: #{tpu_custom_call.1} parent=0
    #allocation2 [shape = 'u8[8192]{0}', space=vmem, size = 0x2000, scoped, tag = 'output window, operand 0']
    #allocation3 [shape = 's32[2]{0}', space=sflag, size = 0x8, scoped, tag = 'scoped memory for tpu_custom_call.1']
    %8 = vsyncpa [#allocation3], 0
    %s9 = scalar_lea.sflag [#allocation3], 1
    %10 = vsyncpa %s9, 0
    loop: start=0, step=1, limit=4
    $region2: #{tpu_custom_call.1} parent=1 // loop_pre_header
      _
    $region3: #{tpu_custom_call.1} parent=1 // loop_header
      %s12 = sphi 0, %s16
      %p13 = scmp.ge.s32.totalorder %s12, 4
      %s22 = sphi 0, %s24
      %s25 = sphi 0, %s22
      %s26 = sphi 0, %s25
      %s42 = sphi 0, %s26
      %s48 = sphi 0, %s50
      %s51 = sphi 0, %s48
      %s52 = sphi 0, %s51
      %s68 = sphi 0, %s52
      %s74 = sphi 0, %s76
      %s77 = sphi 0, %s74
      %s78 = sphi 0, %s77
      %s94 = sphi 0, %s78
      %s100 = sphi 0, %s102
      %s103 = sphi 0, %s100
      %s104 = sphi 0, %s103
      %s120 = sphi 0, %s104
    $region4: #{tpu_custom_call.1} parent=1 // loop_header_branch
      %15 = sbr.rel (%p13) target = $region8
    $region5: #{tpu_custom_call.1} parent=1 // loop_body
      %s17 = ssub.s32 %s12, 1
      %s18 = ssub.s32 %s12, 2
      %s19 = sadd.s32 %s12, 1
      %s20 = ssub.s32 %s12, %s19
      %p21 = scmp.eq.s32.totalorder %s20, 0
      %s23 = sadd.s32 %s22, 1
      %s24 = scalar_select %p21, %s22, %s23
      %p27 = pneg %p21
      %p28 = scmp.eq.s32.totalorder %s12, 1
      %p29 = por %p27, %p28
      %p30 = scmp.ne.s32.totalorder %s22, %s25
      %p31 = scmp.eq.s32.totalorder %s12, 0
      %p32 = por %p30, %p31
      %p33 = scmp.ne.s32.totalorder %s22, %s25
      %p34 = scmp.eq.s32.totalorder %s17, 1
      %p35 = por %p33, %p34
      %p36 = scmp.ne.s32.totalorder %s25, %s26
      %p37 = scmp.eq.s32.totalorder %s17, 0
      %p38 = por %p36, %p37
      %p39 = scmp.ne.s32.totalorder %s25, %s26
      %p40 = scmp.eq.s32.totalorder %s18, 1
      %p41 = por %p39, %p40
      %p43 = scmp.ne.s32.totalorder %s26, %s42
      %p44 = scmp.eq.s32.totalorder %s18, 0
      %p45 = por %p43, %p44
      %s46 = ssub.s32 %s12, %s19
      %p47 = scmp.eq.s32.totalorder %s46, 0
      %s49 = sadd.s32 %s48, 1
      %s50 = scalar_select %p47, %s48, %s49
      %p53 = pneg %p47
      %p54 = scmp.eq.s32.totalorder %s12, 1
      %p55 = por %p53, %p54
      %p56 = scmp.ne.s32.totalorder %s48, %s51
      %p57 = scmp.eq.s32.totalorder %s12, 0
      %p58 = por %p56, %p57
      %p59 = scmp.ne.s32.totalorder %s48, %s51
      %p60 = scmp.eq.s32.totalorder %s17, 1
      %p61 = por %p59, %p60
      %p62 = scmp.ne.s32.totalorder %s51, %s52
      %p63 = scmp.eq.s32.totalorder %s17, 0
      %p64 = por %p62, %p63
      %p65 = scmp.ne.s32.totalorder %s51, %s52
      %p66 = scmp.eq.s32.totalorder %s18, 1
      %p67 = por %p65, %p66
      %p69 = scmp.ne.s32.totalorder %s52, %s68
      %p70 = scmp.eq.s32.totalorder %s18, 0
      %p71 = por %p69, %p70
      %s72 = ssub.s32 %s12, %s19
      %p73 = scmp.eq.s32.totalorder %s72, 0
      %s75 = sadd.s32 %s74, 1
      %s76 = scalar_select %p73, %s74, %s75
      %p79 = pneg %p73
      %p80 = scmp.eq.s32.totalorder %s12, 1
      %p81 = por %p79, %p80
      %p82 = scmp.ne.s32.totalorder %s74, %s77
      %p83 = scmp.eq.s32.totalorder %s12, 0
      %p84 = por %p82, %p83
      %p85 = scmp.ne.s32.totalorder %s74, %s77
      %p86 = scmp.eq.s32.totalorder %s17, 1
      %p87 = por %p85, %p86
      %p88 = scmp.ne.s32.totalorder %s77, %s78
      %p89 = scmp.eq.s32.totalorder %s17, 0
      %p90 = por %p88, %p89
      %p91 = scmp.ne.s32.totalorder %s77, %s78
      %p92 = scmp.eq.s32.totalorder %s18, 1
      %p93 = por %p91, %p92
      %p95 = scmp.ne.s32.totalorder %s78, %s94
      %p96 = scmp.eq.s32.totalorder %s18, 0
      %p97 = por %p95, %p96
      %s98 = ssub.s32 %s12, %s19
      %p99 = scmp.eq.s32.totalorder %s98, 0
      %s101 = sadd.s32 %s100, 1
      %s102 = scalar_select %p99, %s100, %s101
      %p105 = pneg %p99
      %p106 = scmp.eq.s32.totalorder %s12, 1
      %p107 = por %p105, %p106
      %p108 = scmp.ne.s32.totalorder %s100, %s103
      %p109 = scmp.eq.s32.totalorder %s12, 0
      %p110 = por %p108, %p109
      %p111 = scmp.ne.s32.totalorder %s100, %s103
      %p112 = scmp.eq.s32.totalorder %s17, 1
      %p113 = por %p111, %p112
      %p114 = scmp.ne.s32.totalorder %s103, %s104
      %p115 = scmp.eq.s32.totalorder %s17, 0
      %p116 = por %p114, %p115
      %p117 = scmp.ne.s32.totalorder %s103, %s104
      %p118 = scmp.eq.s32.totalorder %s18, 1
      %p119 = por %p117, %p118
      %p121 = scmp.ne.s32.totalorder %s104, %s120
      %p122 = scmp.eq.s32.totalorder %s18, 0
      %p123 = por %p121, %p122
      %p124 = scmp.le.s32.totalorder 1, %s12
      %p125 = scmp.lt.s32.totalorder %s12, 3
      %p126 = pnand %p124, %p125
      %p127 = pneg %p126
      // Predicated region
      $region9: #{tpu_custom_call.1} parent=5 // pred_check
        _
      $region10: #{tpu_custom_call.1} parent=5 // pred_check_branch
        %129 = sbr.rel (%p126) target = $region12
      $region11: #{tpu_custom_call.1} parent=5 // pred_region
        %s130 = ssub.s32 %s12, 1
      $region12: #{tpu_custom_call.1} parent=5 // pred_fallthru
        _
      %p131 = scmp.lt.s32.totalorder %s12, 2
      // Predicated region
      $region13: #{tpu_custom_call.1} parent=5 // pred_check
        %p132 = pneg %p131
      $region14: #{tpu_custom_call.1} parent=5 // pred_check_branch
        %134 = sbr.rel (%p132) target = $region16
      $region15: #{tpu_custom_call.1} parent=5 // pred_region
        // Predicated region
        $region17: #{tpu_custom_call.1} parent=15 // pred_check
          %p135 = pneg %p32
        $region18: #{tpu_custom_call.1} parent=15 // pred_check_branch
          %137 = sbr.rel (%p135) target = $region20
        $region19: #{tpu_custom_call.1} parent=15 // pred_region
          %p138 = scmp.lt.s32.totalorder %s12, 1
          %s139 = scalar_select %p138, %s12, 1
          %s140 = smul.addr %s139, 8
          %s141 = scalar_lea.vmem %s0, %s140
        $region20: #{tpu_custom_call.1} parent=15 // pred_fallthru
          _
        // Predicated region
        $region21: #{tpu_custom_call.1} parent=15 // pred_check
          %p142 = pneg %p58
        $region22: #{tpu_custom_call.1} parent=15 // pred_check_branch
          %144 = sbr.rel (%p142) target = $region24
        $region23: #{tpu_custom_call.1} parent=15 // pred_region
          %p145 = scmp.lt.s32.totalorder %s12, 1
          %s146 = scalar_select %p145, %s12, 1
          %s147 = smul.addr %s146, 8
          %s148 = scalar_lea.vmem %s1, %s147
        $region24: #{tpu_custom_call.1} parent=15 // pred_fallthru
          _
        // Predicated region
        $region25: #{tpu_custom_call.1} parent=15 // pred_check
          %p149 = pneg %p84
        $region26: #{tpu_custom_call.1} parent=15 // pred_check_branch
          %151 = sbr.rel (%p149) target = $region28
        $region27: #{tpu_custom_call.1} parent=15 // pred_region
          %p152 = scmp.lt.s32.totalorder %s12, 1
          %s153 = scalar_select %p152, %s12, 1
          %s154 = smul.addr %s153, 8
          %s155 = scalar_lea.vmem %s2, %s154
        $region28: #{tpu_custom_call.1} parent=15 // pred_fallthru
          _
      $region16: #{tpu_custom_call.1} parent=5 // pred_fallthru
        _
      %p156 = scmp.le.s32.totalorder 1, %s12
      %p157 = scmp.lt.s32.totalorder %s12, 3
      %p158 = pnand %p156, %p157
      %p159 = pneg %p158
      // Predicated region
      $region29: #{tpu_custom_call.1} parent=5 // pred_check
        _
      $region30: #{tpu_custom_call.1} parent=5 // pred_check_branch
        %161 = sbr.rel (%p158) target = $region32
      $region31: #{tpu_custom_call.1} parent=5 // pred_region
        %s162 = ssub.s32 %s12, 1
        %p163 = scmp.lt.s32.totalorder %s17, 1
        %s164 = scalar_select %p163, %s17, 1
        %s165 = smul.addr %s164, 8
        %s166 = scalar_lea.vmem %s0, %s165
        %p167 = pneg %p38
        %p168 = pneg %p35
        %p169 = scmp.lt.s32.totalorder %s17, 1
        %s170 = scalar_select %p169, %s17, 1
        %s171 = smul.addr %s170, 8
        %s172 = scalar_lea.vmem %s1, %s171
        %p173 = pneg %p64
        %p174 = pneg %p61
        %p175 = scmp.lt.s32.totalorder %s17, 1
        %s176 = scalar_select %p175, %s17, 1
        %s177 = smul.addr %s176, 8
        %s178 = scalar_lea.vmem %s2, %s177
        %p179 = pneg %p90
        %p180 = pneg %p87
        %p181 = pneg %p116
        %p182 = pneg %p113
        %s183 = sand.u32 %s103, 1
        %s184 = scalar_lea.sflag [#allocation3], %s183
        %s185 = sand.u32 %s103, 1
        %s186 = smul.addr %s185, 8
        %s187 = scalar_lea.vmem [#allocation2], %s186
        %p188 = scmp.lt.s32.totalorder %s17, 1
        %s189 = scalar_select %p188, %s17, 1
        %s190 = smul.addr %s189, 8
        %s191 = scalar_lea.vmem %s0, %s190
        %p192 = scmp.lt.s32.totalorder %s17, 1
        %s193 = scalar_select %p192, %s17, 1
        %s194 = smul.addr %s193, 8
        %s195 = scalar_lea.vmem %s1, %s194
        %p196 = scmp.lt.s32.totalorder %s17, 1
        %s197 = scalar_select %p196, %s17, 1
        %s198 = smul.addr %s197, 8
        %s199 = scalar_lea.vmem %s2, %s198
        %v200 = vld [vmem:[%s191] sm:$0xff]
        %201 = vrot.lane.b32.xlu0 %v200, 127
        %v202 = vpop.permute.xlu0 %201
        %203 = vrot.lane.b32.xlu0 %v200, 1
        %v204 = vpop.permute.xlu0 %203
        %v205 = vlaneseq
        %v206 = vand.u32 %v205, 127
        %v207 = vand.u32 %v206, 1
        %vm208 = vcmp.eq.s32.totalorder %v207, 0
        %v209 = vsel %vm208, 1, 0
        %vm210 = vcmp.eq.s32.totalorder %v209, 1
        %v211 = vsel %vm210, %v202, %v204
        %v212 = vld [vmem:[%s195] sm:$0xff]
        %v213 = vld [vmem:[%s199] sm:$0xff]
        %v214 = vsel %vm208, -1.0, 1.0
        %216 = vset.pattern.permute.xlu0 0
        %217 = vperm.xlu0 %216, %v212
        %v218 = vpop.permute.xlu0 %217
        %v220 = vmul.f32 %v200, %v218
        %222 = vset.pattern.permute.xlu0 0
        %223 = vperm.xlu0 %222, %v213
        %v224 = vpop.permute.xlu0 %223
        %v226 = vmul.f32 %v224, %v214
        %v227 = vmul.f32 %v211, %v226
        %v228 = vadd.f32 %v220, %v227
        %229 = vst [vmem:[%s187] sm:$0xff] %v228
        %s230 = sand.u32 %s103, 1
        %s231 = scalar_lea.sflag [#allocation3], %s230
        %s232 = sand.u32 %s103, 1
        %s233 = smul.addr %s232, 8
        %s234 = scalar_lea.vmem [#allocation2], %s233
        // Predicated region
        $region33: #{tpu_custom_call.1} parent=31 // pred_check
          %p235 = pneg %p113
        $region34: #{tpu_custom_call.1} parent=31 // pred_check_branch
          %237 = sbr.rel (%p235) target = $region36
        $region35: #{tpu_custom_call.1} parent=31 // pred_region
          %s239 = ssub.s32 128, 128
          %240 = vsyncadd %s231, %s239
          %s241 = smul.addr %s17, 128
          %s242 = scalar_lea.hbm %s3, %s241
          %s244 = sshll.u32 %s234, 4
          %s245 = int_to_ptr.vmem [resolvable:$true] %s244
          %247 = dma.vmem_to_hbm [thread:$0]  %s245, 128, %s242, %s231
        $region36: #{tpu_custom_call.1} parent=31 // pred_fallthru
          _
      $region32: #{tpu_custom_call.1} parent=5 // pred_fallthru
        _
      %p248 = scmp.le.s32.totalorder 2, %s12
      // Predicated region
      $region37: #{tpu_custom_call.1} parent=5 // pred_check
        %p249 = pneg %p248
      $region38: #{tpu_custom_call.1} parent=5 // pred_check_branch
        %251 = sbr.rel (%p249) target = $region40
      $region39: #{tpu_custom_call.1} parent=5 // pred_region
        %s252 = ssub.s32 %s12, 2
        // Predicated region
        $region41: #{tpu_custom_call.1} parent=39 // pred_check
          %p253 = pneg %p119
        $region42: #{tpu_custom_call.1} parent=39 // pred_check_branch
          %255 = sbr.rel (%p253) target = $region44
        $region43: #{tpu_custom_call.1} parent=39 // pred_region
          %s256 = sand.u32 %s104, 1
          %s257 = scalar_lea.sflag [#allocation3], %s256
          %s258 = sand.u32 %s104, 1
          %s259 = smul.addr %s258, 8
          %s260 = scalar_lea.vmem [#allocation2], %s259
          %261 = dma.done %s257, 128
        $region44: #{tpu_custom_call.1} parent=39 // pred_fallthru
          _
      $region40: #{tpu_custom_call.1} parent=5 // pred_fallthru
        _
    $region6: #{tpu_custom_call.1} parent=1 // loop_footer
      %s16 = sadd.s32 1, %s12
    $region7: #{tpu_custom_call.1} parent=1 // loop_footer_branch
      %11 = sbr.rel target = $region3
    $region8: #{tpu_custom_call.1} parent=1 // loop_exit
      _
    %262 = vsyncpa [#allocation3], 1
    %s263 = scalar_lea.sflag [#allocation3], 1
    %264 = vsyncpa %s263, 1

</llo_original>
